<compile_context>
chip_gen: v7x
topology: tpu7x:2x2x1
jax: 0.10.0
libtpu: 0.0.40
codegen_flags: <defaults>
</compile_context>

<pallas_src>
import functools

import jax
import jax.numpy as jnp
from jax.experimental import pallas as pl
from jax.experimental.pallas import tpu as pltpu


def _round_up(n, m):
    return ((n + m - 1) // m) * m


def _ceil_div(a, b):
    return -(-a // b)


def _rbf_net_kernel(xs_ref, c_ref, s_ref, w_ref, o_ref, *, period, inv_period):
    """One T-tile of the RBF-CPG forward pass (time on lanes).

    xs_ref : (2, Tb)  row 0 = x, row 1 = -reverse(x)
    c_ref  : (R, 1)   RBF centres
    s_ref  : (R, 1)   RBF sigmas
    w_ref  : (S, R)   linear weight (nn.Linear, no bias)
    o_ref  : (S, Tb)  output tile (signals on sublanes, time on lanes)
    """
    c = c_ref[...]                  # (R, 1)
    s = s_ref[...]                  # (R, 1)
    x1 = xs_ref[0:1, :]             # (1, Tb)
    x2 = xs_ref[1:2, :]             # (1, Tb)

    def wrap_sq(diff):              # (R, Tb) -> (R, Tb)
        # periodic wrap of the distance onto [-period/2, period/2);
        # multiply by inv_period keeps this on the VPU (no EUP reciprocal).
        diff = diff - period * jnp.floor(diff * inv_period + 0.5)
        d = s * diff
        return d * d

    diff1 = x1 - c                                     # (R, Tb), reused below
    sq = jnp.minimum(wrap_sq(diff1), wrap_sq(x2 - c))
    if period != 1.0:
        # third phase input x3 = x + 1; reuse the broadcast diff (diff3 = diff1 + 1).
        sq = jnp.minimum(sq, wrap_sq(diff1 + 1.0))
    # else: under period == 1 the (1 + x) branch wraps to exactly the x branch.

    # exp is monotone: max of the exps == exp of the min squared distance.
    phi = jnp.exp(-sq)                                 # (R, Tb), single exp

    # Tiny (S,R)x(R,Tb) contraction on the otherwise-idle MXU.
    acc = jnp.dot(w_ref[...], phi, preferred_element_type=jnp.float32)
    o_ref[...] = acc.astype(o_ref.dtype)


def learning_network_forward(x, centres, sigmas, weight, *, period=1.0,
                             t_tile=4096, out_dtype=jnp.float32,
                             output_time_major=True):
    """JAX wrapper reproducing Learning_network.forward.

    x       : (T,)   phase samples
    centres : (R,)   RBF centres
    sigmas  : (R,)   RBF widths
    weight  : (S, R) nn.Linear weight (no bias)
    returns : (T, S) if output_time_major else (S, T)  (lane-dense, no transpose)
    """
    x = jnp.asarray(x, jnp.float32).reshape(-1)
    T = x.shape[0]
    R = int(centres.shape[0])
    S = int(weight.shape[0])

    # --- tiling: time on lanes, >= 2 grid steps when there is enough work ------
    t128 = _round_up(T, 128)
    tb_max = min(_round_up(int(t_tile), 128), t128)
    n_tiles = max(_ceil_div(t128, tb_max), 2 if t128 >= 256 else 1)
    tb = _round_up(_ceil_div(t128, n_tiles), 128)
    t_pad = tb * n_tiles
    pad = t_pad - T

    x_fwd = jnp.pad(x, (0, pad))
    x_rev = jnp.pad(-x[::-1], (0, pad))
    xs = jnp.stack([x_fwd, x_rev], axis=0)                       # (2, t_pad)

    c_col = jnp.asarray(centres, jnp.float32).reshape(R, 1)      # (R, 1)
    s_col = jnp.asarray(sigmas, jnp.float32).reshape(R, 1)       # (R, 1)
    w_mat = jnp.asarray(weight, jnp.float32).reshape(S, R)       # (S, R)

    kernel = functools.partial(
        _rbf_net_kernel, period=float(period), inv_period=1.0 / float(period))

    out_st = pl.pallas_call(
        kernel,
        out_shape=jax.ShapeDtypeStruct((S, t_pad), out_dtype),
        grid=(n_tiles,),
        in_specs=[
            pl.BlockSpec((2, tb), lambda i: (0, i)),         # packed [x, -rev(x)]
            pl.BlockSpec((R, 1), lambda i: (0, 0)),          # centres (replicated)
            pl.BlockSpec((R, 1), lambda i: (0, 0)),          # sigmas  (replicated)
            pl.BlockSpec((S, R), lambda i: (0, 0)),          # weight  (replicated)
        ],
        out_specs=pl.BlockSpec((S, tb), lambda i: (0, i)),
        compiler_params=pltpu.CompilerParams(
            dimension_semantics=("parallel",)),              # shards over v7x's 2 TCs
    )(xs, c_col, s_col, w_mat)

    out_st = out_st[:, :T]                                       # (S, T)
    if output_time_major:
        # Module semantics: (T, S).  Skipping this (output_time_major=False)
        # avoids a full extra HBM read+write pass (cheapest on v7x, priciest on v5e).
        return out_st.T
    return out_st


def reference_forward(x, centres, sigmas, weight, *, period=1.0):
    """Pure-JAX reference (original max-of-three-exps form)."""
    x = jnp.asarray(x, jnp.float32)
    centres = jnp.asarray(centres, jnp.float32)
    sigmas = jnp.asarray(sigmas, jnp.float32)
    weight = jnp.asarray(weight, jnp.float32)
    inv_period = 1.0 / float(period)

    def phi(xv):  # (T,) -> (T, R)
        diff = xv[:, None] - centres[None, :]
        diff = diff - period * jnp.floor(diff * inv_period + 0.5)
        d = sigmas[None, :] * diff
        return jnp.exp(-(d * d))

    p = jnp.maximum(jnp.maximum(phi(x), phi(-x[::-1])), phi(1.0 + x))
    return p @ weight.T


if __name__ == "__main__":
    # Configuration consistent with the module: num_rbf = 6, n_signals = 9
    # (matches set_params_from_array's 9-row mask), period = 1.0.
    R, S = 6, 9

    key = jax.random.PRNGKey(0)
    k_x, k_w, k_x2, k_x3 = jax.random.split(key, 4)

    centres = jnp.array([i / R for i in range(R)], dtype=jnp.float32)      # (R,)
    sigmas = jnp.full((R,), 10.0, dtype=jnp.float32)                        # (R,)
    weight = 0.6 * jax.random.uniform(k_w, (S, R), dtype=jnp.float32)       # (S, R)

    # --- small case (T = 16, single lane-tile), default period == 1.0 ----------
    T = 16
    x = jax.random.uniform(k_x, (T,), dtype=jnp.float32)
    y = jax.block_until_ready(
        learning_network_forward(x, centres, sigmas, weight, period=1.0))
    y_ref = reference_forward(x, centres, sigmas, weight, period=1.0)
    assert y.shape == (T, S), y.shape
    assert jnp.allclose(y, y_ref, atol=1e-5, rtol=1e-5), \
        f"small-T max abs err = {jnp.max(jnp.abs(y - y_ref))}"

    # --- multi-tile case (T not a multiple of the tile, grid >= 2) -------------
    T2 = 300
    x2 = jax.random.uniform(k_x2, (T2,), dtype=jnp.float32)
    y2 = jax.block_until_ready(
        learning_network_forward(x2, centres, sigmas, weight, period=1.0))
    y2_ref = reference_forward(x2, centres, sigmas, weight, period=1.0)
    assert y2.shape == (T2, S), y2.shape
    assert jnp.allclose(y2, y2_ref, atol=1e-5, rtol=1e-5), \
        f"multi-tile max abs err = {jnp.max(jnp.abs(y2 - y2_ref))}"

    # --- non-unit period exercises the third (1 + x) branch + lane-dense output -
    T3 = 257
    x3 = jax.random.uniform(k_x3, (T3,), dtype=jnp.float32)
    y3 = jax.block_until_ready(
        learning_network_forward(x3, centres, sigmas, weight, period=2.0,
                                 output_time_major=False))
    y3_ref = reference_forward(x3, centres, sigmas, weight, period=2.0).T
    assert y3.shape == (S, T3), y3.shape
    assert jnp.allclose(y3, y3_ref, atol=1e-5, rtol=1e-5), \
        f"period!=1 max abs err = {jnp.max(jnp.abs(y3 - y3_ref))}"

    print("KERNEL_OK")
</pallas_src>

<mosaic_0001>
module attributes {stable_mosaic.version = 11 : i64} {
  func.func @_rbf_net_kernel(%arg0: i32, %arg1: memref<2x128xf32, #tpu.memory_space<vmem>>, %arg2: memref<6x1xf32, #tpu.memory_space<vmem>>, %arg3: memref<6x1xf32, #tpu.memory_space<vmem>>, %arg4: memref<9x6xf32, #tpu.memory_space<vmem>>, %arg5: memref<9x128xf32, #tpu.memory_space<vmem>>) attributes {dimension_semantics = [#tpu.dimension_semantics<parallel>], iteration_bounds = array<i64: 1>, scalar_prefetch = 0 : i64, scratch_operands = 0 : i64, tpu.core_type = #tpu.core_type<tc>, window_params = [{transform_indices = @transform_0, window_bounds = array<i64: 2, 128>}, {pipeline_mode = #tpu.pipeline_mode<synchronous>, transform_indices = @transform_1, window_bounds = array<i64: 6, 1>}, {pipeline_mode = #tpu.pipeline_mode<synchronous>, transform_indices = @transform_2, window_bounds = array<i64: 6, 1>}, {pipeline_mode = #tpu.pipeline_mode<synchronous>, transform_indices = @transform_3, window_bounds = array<i64: 9, 6>}, {transform_indices = @transform_4, window_bounds = array<i64: 9, 128>}]} {
    %c0 = arith.constant 0 : index
    %c0_0 = arith.constant 0 : index
    %0 = vector.load %arg2[%c0, %c0_0] : memref<6x1xf32, #tpu.memory_space<vmem>>, vector<6x1xf32>
    %c0_1 = arith.constant 0 : index
    %c0_2 = arith.constant 0 : index
    %1 = vector.load %arg3[%c0_1, %c0_2] : memref<6x1xf32, #tpu.memory_space<vmem>>, vector<6x1xf32>
    %c0_3 = arith.constant 0 : index
    %c0_4 = arith.constant 0 : index
    %2 = vector.load %arg1[%c0_3, %c0_4] : memref<2x128xf32, #tpu.memory_space<vmem>>, vector<1x128xf32>
    %c1 = arith.constant 1 : index
    %c0_5 = arith.constant 0 : index
    %3 = vector.load %arg1[%c1, %c0_5] : memref<2x128xf32, #tpu.memory_space<vmem>>, vector<1x128xf32>
    %4 = vector.broadcast %2 : vector<1x128xf32> to vector<6x128xf32>
    %5 = vector.broadcast %0 : vector<6x1xf32> to vector<6x128xf32>
    %6 = arith.subf %4, %5 : vector<6x128xf32>
    %cst = arith.constant 1.000000e+00 : f32
    %7 = vector.broadcast %cst : f32 to vector<6x128xf32>
    %8 = arith.mulf %6, %7 : vector<6x128xf32>
    %cst_6 = arith.constant 5.000000e-01 : f32
    %9 = vector.broadcast %cst_6 : f32 to vector<6x128xf32>
    %10 = arith.addf %8, %9 : vector<6x128xf32>
    %11 = math.floor %10 : vector<6x128xf32>
    %cst_7 = arith.constant 1.000000e+00 : f32
    %12 = vector.broadcast %cst_7 : f32 to vector<6x128xf32>
    %13 = arith.mulf %12, %11 : vector<6x128xf32>
    %14 = arith.subf %6, %13 : vector<6x128xf32>
    %15 = vector.broadcast %1 : vector<6x1xf32> to vector<6x128xf32>
    %16 = arith.mulf %15, %14 : vector<6x128xf32>
    %17 = arith.mulf %16, %16 : vector<6x128xf32>
    %18 = vector.broadcast %3 : vector<1x128xf32> to vector<6x128xf32>
    %19 = vector.broadcast %0 : vector<6x1xf32> to vector<6x128xf32>
    %20 = arith.subf %18, %19 : vector<6x128xf32>
    %cst_8 = arith.constant 1.000000e+00 : f32
    %21 = vector.broadcast %cst_8 : f32 to vector<6x128xf32>
    %22 = arith.mulf %20, %21 : vector<6x128xf32>
    %cst_9 = arith.constant 5.000000e-01 : f32
    %23 = vector.broadcast %cst_9 : f32 to vector<6x128xf32>
    %24 = arith.addf %22, %23 : vector<6x128xf32>
    %25 = math.floor %24 : vector<6x128xf32>
    %cst_10 = arith.constant 1.000000e+00 : f32
    %26 = vector.broadcast %cst_10 : f32 to vector<6x128xf32>
    %27 = arith.mulf %26, %25 : vector<6x128xf32>
    %28 = arith.subf %20, %27 : vector<6x128xf32>
    %29 = vector.broadcast %1 : vector<6x1xf32> to vector<6x128xf32>
    %30 = arith.mulf %29, %28 : vector<6x128xf32>
    %31 = arith.mulf %30, %30 : vector<6x128xf32>
    %32 = arith.minimumf %17, %31 : vector<6x128xf32>
    %cst_11 = arith.constant 0.000000e+00 : f32
    %33 = vector.broadcast %cst_11 : f32 to vector<6x128xf32>
    %34 = arith.subf %33, %32 : vector<6x128xf32>
    %35 = math.exp %34 : vector<6x128xf32>
    %c0_12 = arith.constant 0 : index
    %c0_13 = arith.constant 0 : index
    %36 = vector.load %arg4[%c0_12, %c0_13] : memref<9x6xf32, #tpu.memory_space<vmem>>, vector<9x6xf32>
    %cst_14 = arith.constant dense<0.000000e+00> : vector<9x128xf32>
    %37 = tpu.matmul %36, %35, %cst_14 {dimension_numbers = #tpu.dot_dimension_numbers<[1], [0], [0], [1], [0, 0, 1, 1], [], []>} : vector<9x6xf32>, vector<6x128xf32>, vector<9x128xf32> -> vector<9x128xf32>
    %c0_15 = arith.constant 0 : index
    %c0_16 = arith.constant 0 : index
    %38 = vector.load %arg5[%c0_15, %c0_16] : memref<9x128xf32, #tpu.memory_space<vmem>>, vector<9x128xf32>
    tpu.vector_store %arg5[%c0_15, %c0_16], %37 {strides = array<i32>} : memref<9x128xf32, #tpu.memory_space<vmem>>, vector<9x128xf32>,
    return
  }
  func.func @transform_0(%arg0: i32) -> (i32, i32) {
    %c0_i32 = arith.constant 0 : i32
    %c0_i32_0 = arith.constant 0 : i32
    return %c0_i32, %arg0 : i32, i32
  }
  func.func @transform_1(%arg0: i32) -> (i32, i32) {
    %c0_i32 = arith.constant 0 : i32
    %c0_i32_0 = arith.constant 0 : i32
    %c0_i32_1 = arith.constant 0 : i32
    return %c0_i32, %c0_i32_0 : i32, i32
  }
  func.func @transform_2(%arg0: i32) -> (i32, i32) {
    %c0_i32 = arith.constant 0 : i32
    %c0_i32_0 = arith.constant 0 : i32
    %c0_i32_1 = arith.constant 0 : i32
    return %c0_i32, %c0_i32_0 : i32, i32
  }
  func.func @transform_3(%arg0: i32) -> (i32, i32) {
    %c0_i32 = arith.constant 0 : i32
    %c0_i32_0 = arith.constant 0 : i32
    %c0_i32_1 = arith.constant 0 : i32
    return %c0_i32, %c0_i32_0 : i32, i32
  }
  func.func @transform_4(%arg0: i32) -> (i32, i32) {
    %c0_i32 = arith.constant 0 : i32
    %c0_i32_0 = arith.constant 0 : i32
    return %c0_i32, %arg0 : i32, i32
  }
}

</mosaic_0001>

<llo_original>
// kernel: tpu_custom_call.1
$region0: #{tpu_custom_call.1}
  #allocation0 [shape = 'u32[]', space=smem, size = 0x4, offset = 0x4, fixed_abs, tag = 'smem constant byte address 0x4 - core index']
  #allocation1 [shape = 'u32[144,128]{1,0:T(1,128)}', space=vmem, size = 0x12000, scoped, tag = 'internal scratch']
  %s0 = inlined_call_operand.vmem [shape: f32[2,128], index: 0, kind: input, shape index: {}]
  %s1 = inlined_call_operand.vmem [shape: f32[6,1], index: 1, kind: input, shape index: {}]
  %s2 = inlined_call_operand.vmem [shape: f32[6,1], index: 2, kind: input, shape index: {}]
  %s3 = inlined_call_operand.vmem [shape: f32[9,6], index: 3, kind: input, shape index: {}]
  %s4 = inlined_call_operand.hbm [shape: f32[9,128], index: 4, kind: output, shape index: {}]
  %s5 = sld [smem:[#allocation0]]
  $region26: #{tpu_custom_call.1} parent=0
    _
  %s7 = ssub.s32 1, %s5
  %s8 = scalar_select 0, %s7, %s5
  $region1: #{tpu_custom_call.1} parent=0
    #allocation2 [shape = 'u8[8192]{0}', space=vmem, size = 0x2000, scoped, tag = 'output window, operand 0, single buffered']
    #allocation3 [shape = 's32[1]{0}', space=sflag, size = 0x4, scoped, tag = 'scoped memory for tpu_custom_call.1']
    %9 = vsyncpa [#allocation3], 0
    // Predicated region
    $region2: #{tpu_custom_call.1} parent=1 // pred_check
      _
    $region3: #{tpu_custom_call.1} parent=1 // pred_check_branch
      %11 = sbr.rel (0) target = $region5
    $region4: #{tpu_custom_call.1} parent=1 // pred_region
      _
    $region5: #{tpu_custom_call.1} parent=1 // pred_fallthru
      _
    // Predicated region
    $region6: #{tpu_custom_call.1} parent=1 // pred_check
      _
    $region7: #{tpu_custom_call.1} parent=1 // pred_check_branch
      %13 = sbr.rel (0) target = $region9
    $region8: #{tpu_custom_call.1} parent=1 // pred_region
      _
    $region9: #{tpu_custom_call.1} parent=1 // pred_fallthru
      _
    // Predicated region
    $region10: #{tpu_custom_call.1} parent=1 // pred_check
      _
    $region11: #{tpu_custom_call.1} parent=1 // pred_check_branch
      %15 = sbr.rel (0) target = $region13
    $region12: #{tpu_custom_call.1} parent=1 // pred_region
      _
    $region13: #{tpu_custom_call.1} parent=1 // pred_fallthru
      _
    // Predicated region
    $region14: #{tpu_custom_call.1} parent=1 // pred_check
      _
    $region15: #{tpu_custom_call.1} parent=1 // pred_check_branch
      %17 = sbr.rel (0) target = $region17
    $region16: #{tpu_custom_call.1} parent=1 // pred_region
      _
    $region17: #{tpu_custom_call.1} parent=1 // pred_fallthru
      _
    %v18 = vld [vmem:[%s1] sm:$0x3f]
    %v19 = vld [vmem:[%s2] sm:$0x3f]
    %v20 = vld [vmem:[%s0] sm:$0x1]
    %v21 = vld [vmem:[%s0 + $0x1] sm:$0x1]
    %v22 = vlaneseq
    %v23 = vshrl.u32 %v22, 7
    %v24 = vsub.s32 0, %v23
    %v25 = vrot.slane %v20, %v24
    %27 = vset.pattern.permute.xlu0 0
    %28 = vperm.xlu0 %27, %v18
    %v29 = vpop.permute.xlu0 %28
    %v31 = vsub.f32 %v25, %v29
    %v32 = vadd.f32 %v31, 0.5
    %v33 = vfloor.f32 %v32
    %v34 = vsub.f32 %v31, %v33
    %36 = vset.pattern.permute.xlu0 0
    %37 = vperm.xlu0 %36, %v19
    %v38 = vpop.permute.xlu0 %37
    %v40 = vmul.f32 %v38, %v34
    %v41 = vmul.f32 %v40, %v40
    %v42 = vlaneseq
    %v43 = vshrl.u32 %v42, 7
    %v44 = vsub.s32 0, %v43
    %v45 = vrot.slane %v21, %v44
    %v46 = vsub.f32 %v45, %v29
    %v47 = vadd.f32 %v46, 0.5
    %v48 = vfloor.f32 %v47
    %v49 = vsub.f32 %v46, %v48
    %v50 = vmul.f32 %v38, %v49
    %v51 = vmul.f32 %v50, %v50
    %v52 = vmin.f32 %v41, %v51
    %v53 = vsub.f32 0.0, %v52
    %v54 = vmul.f32 %v53, 1.442695
    %v55 = vpow.pop %v54
    %v56 = vld [vmem:[%s3] sm:$0xff]
    %v57 = vld [vmem:[%s3 + $0x8] sm:$0x1]
    %vm58 = vcmask 48128
    %v60 = vsel %vm58, %v56, 0
    %v63 = vsel %vm58, %v57, 0
    %vm65 = vcmask 1045504
    %v67 = vsel %vm65, %v55, 0
    %69 = vmatprep.subr.mxu0 0.0
    %70 = vmatpush1.msra.mxu0 %v67
    %71 = vmatprep.subr.mxu0 0.0
    %72 = vmatpush1.msra.mxu0 0.0
    %73 = vmatprep.subr.mxu0 0.0
    %74 = vmatpush1.msra.mxu0 0.0
    %75 = vmatprep.subr.mxu0 0.0
    %76 = vmatpush1.msra.mxu0 0.0
    %77 = vmatprep.subr.mxu0 0.0
    %78 = vmatpush1.msra.mxu0 0.0
    %79 = vmatprep.subr.mxu0 0.0
    %80 = vmatpush1.msra.mxu0 0.0
    %81 = vmatprep.subr.mxu0 0.0
    %82 = vmatpush1.msra.mxu0 0.0
    %83 = vmatprep.subr.mxu0 0.0
    %84 = vmatpush1.msra.mxu0 0.0
    %85 = vmatprep.subr.mxu0 0.0
    %86 = vmatpush1.msra.mxu0 0.0
    %87 = vmatprep.subr.mxu0 0.0
    %88 = vmatpush1.msra.mxu0 0.0
    %89 = vmatprep.subr.mxu0 0.0
    %90 = vmatpush1.msra.mxu0 0.0
    %91 = vmatprep.subr.mxu0 0.0
    %92 = vmatpush1.msra.mxu0 0.0
    %93 = vmatprep.subr.mxu0 0.0
    %94 = vmatpush1.msra.mxu0 0.0
    %95 = vmatprep.subr.mxu0 0.0
    %96 = vmatpush1.msra.mxu0 0.0
    %97 = vmatprep.subr.mxu0 0.0
    %98 = vmatpush1.msra.mxu0 0.0
    %99 = vmatprep.subr.mxu0 0.0
    %100 = vmatpush1.msra.mxu0 0.0
    %101 = vmatprep.subr.mxu0 0.0
    %102 = vmatpush1.msra.mxu0 0.0
    %103 = vmatprep.subr.mxu0 0.0
    %104 = vmatpush1.msra.mxu0 0.0
    %105 = vmatprep.subr.mxu0 0.0
    %106 = vmatpush1.msra.mxu0 0.0
    %107 = vmatprep.subr.mxu0 0.0
    %108 = vmatpush1.msra.mxu0 0.0
    %109 = vmatprep.subr.mxu0 0.0
    %110 = vmatpush1.msra.mxu0 0.0
    %111 = vmatprep.subr.mxu0 0.0
    %112 = vmatpush1.msra.mxu0 0.0
    %113 = vmatprep.subr.mxu0 0.0
    %114 = vmatpush1.msra.mxu0 0.0
    %115 = vmatprep.subr.mxu0 0.0
    %116 = vmatpush1.msra.mxu0 0.0
    %117 = vmatprep.subr.mxu0 0.0
    %118 = vmatpush1.msra.mxu0 0.0
    %119 = vmatprep.subr.mxu0 0.0
    %120 = vmatpush1.msra.mxu0 0.0
    %121 = vmatprep.subr.mxu0 0.0
    %122 = vmatpush1.msra.mxu0 0.0
    %123 = vmatprep.subr.mxu0 0.0
    %124 = vmatpush1.msra.mxu0 0.0
    %125 = vmatprep.subr.mxu0 0.0
    %126 = vmatpush1.msra.mxu0 0.0
    %127 = vmatprep.subr.mxu0 0.0
    %128 = vmatpush1.msra.mxu0 0.0
    %129 = vmatprep.subr.mxu0 0.0
    %130 = vmatpush1.msra.mxu0 0.0
    %131 = vmatprep.subr.mxu0 0.0
    %132 = vmatpush1.msra.mxu0 0.0
    %133 = vmatprep.mubr.f32.mxu0 0.0
    %134 = vmatmul.mubr.f32.gmra.mrb[0].mxu0 %v60
    %v135 = vpop.f32.mrb[0].mxu0
    %v136 = vadd.f32 0.0, %v135
    %v137 = vpop.f32.mrb[0].mxu0
    %138 = vmatprep.mubr.f32.mxu0 0.0
    %139 = vmatmul.mubr.f32.gmra.mrb[0].mxu0 %v63
    %v140 = vpop.f32.mrb[0].mxu0
    %v141 = vadd.f32 0.0, %v140
    %v142 = vpop.f32.mrb[0].mxu0
    %143 = vdwg.mxu0
    %144 = vst [vmem:[#allocation2] sm:$0xff] %v136
    %145 = vst [vmem:[#allocation2 + $0x8] sm:$0x1] %v141
    // Predicated region
    $region18: #{tpu_custom_call.1} parent=1 // pred_check
      _
    $region19: #{tpu_custom_call.1} parent=1 // pred_check_branch
      %147 = sbr.rel (0) target = $region21
    $region20: #{tpu_custom_call.1} parent=1 // pred_region
      %s149 = ssub.s32 256, 256
      %150 = vsyncadd [#allocation3], %s149
      %s151 = sshll.u32 [#allocation2], 4
      %s152 = int_to_ptr.vmem [resolvable:$true] %s151
      %157 = dma.vmem_to_hbm [thread:$0]  %s152, 256, %s4, [#allocation3], 128, 128, 8
    $region21: #{tpu_custom_call.1} parent=1 // pred_fallthru
      _
    // Predicated region
    $region22: #{tpu_custom_call.1} parent=1 // pred_check
      _
    $region23: #{tpu_custom_call.1} parent=1 // pred_check_branch
      %159 = sbr.rel (0) target = $region25
    $region24: #{tpu_custom_call.1} parent=1 // pred_region
      %160 = dma.done [#allocation3], 256
    $region25: #{tpu_custom_call.1} parent=1 // pred_fallthru
      _
    %161 = vsyncpa [#allocation3], 1

</llo_original>
